<compile_context>
chip_gen: v6e
topology: v6e:2x2x1
jax: 0.10.0
libtpu: 0.0.40
codegen_flags: <defaults>
</compile_context>

<pallas_src>
import functools

import jax
import jax.numpy as jnp
import numpy as np
from jax import lax
from jax.experimental import pallas as pl
from jax.experimental.pallas import tpu as pltpu


def _le_cosine_kernel(x_ref, ynt_ref, t1_ref, t2_ref, out_ref, *,
                      pos_w, neg_w, inv_b2, matmul_dtype):
    eps = 1e-12

    # F.normalize(dim=1) of the X row tile: v * rsqrt(max(||v||^2, eps^2)).
    x = x_ref[...].astype(jnp.float32)
    xn = x * lax.rsqrt(jnp.maximum(jnp.sum(x * x, axis=1, keepdims=True), eps * eps))

    # (TB, D) @ (D, B): Y is pre-normalized and pre-transposed in the wrapper
    # (hoisted out of the grid loop), so no per-tile transpose / re-normalization.
    s = jnp.dot(xn.astype(matmul_dtype), ynt_ref[...],
                preferred_element_type=jnp.float32)

    # Row softmax pieces (denominator is detached in torch -> forward-only anyway).
    e = jnp.exp(s)                                              # (TB, B)
    denom = jnp.sum(e, axis=1, keepdims=True)                   # (TB, 1)

    # pos_mask[i, j] = (t1[i] == t2[j]); (TB,1) vs (1,B) broadcast-compare.
    pos_mask = t1_ref[...] == t2_ref[...]

    # Fused epilogue, two (TB,B) EUP passes total:
    #   negatives:  a * log1p(-softmax)            (exp already computed above)
    #   positives:  b * log(softmax) = b * (s - lse), lse = log(denom) is (TB,1)
    neg_term = neg_w * jnp.log1p(-e * pl.reciprocal(denom, approx=True))
    pos_term = pos_w * (s - jnp.log(denom))
    contrib = jnp.where(pos_mask, pos_term, neg_term)
    partial = -jnp.sum(contrib) * inv_b2

    # Lane-dense (8,128) output block: scalar partial at [0,0], zeros elsewhere.
    rows = lax.broadcasted_iota(jnp.int32, (8, 128), 0)
    cols = lax.broadcasted_iota(jnp.int32, (8, 128), 1)
    out_ref[...] = jnp.where((rows == 0) & (cols == 0), partial, 0.0)
    # TODO(synk): the original module's print() and csv-file side effects are
    # intentionally omitted (host I/O has no Pallas equivalent).


def _vmem_capacity_bytes():
    """Per-core VMEM capacity; conservative 64 MiB (v7x) fallback."""
    try:
        info = pltpu.get_tpu_info()
        cap = getattr(info, "vmem_capacity_bytes", None)
        if cap:
            return int(cap)
    except Exception:
        pass
    return 64 * 1024 * 1024


def _tile_footprint_bytes(tb, batch, dim, mm_bytes):
    """Approximate VMEM bytes needed for one grid step at row-tile size `tb`."""
    f32 = 4
    lane = 128
    y_resident = 2 * batch * dim * mm_bytes            # Y^T (double-buffered by default)
    x_tiles = 2 * tb * dim * f32                       # pipelined X row tiles
    temps = 4 * tb * max(batch, lane) * f32            # live s / e / contrib / mask temps
    labels = 2 * (tb * lane + 8 * max(batch, lane)) * 4
    out_blocks = 2 * 8 * lane * f32
    return y_resident + x_tiles + temps + labels + out_blocks


def _select_block_rows(batch, dim, mm_bytes, budget_bytes):
    """Largest legal row tile whose footprint fits the per-core VMEM budget."""
    candidates = [t for t in (1024, 512, 256, 128, 64, 32, 16, 8) if batch % t == 0]
    candidates.append(batch)                           # full batch is always legal
    for tb in sorted(set(candidates), reverse=True):
        if _tile_footprint_bytes(tb, batch, dim, mm_bytes) <= budget_bytes:
            return tb
    # TODO(synk): for problems where even the smallest tile (resident Y) exceeds
    # VMEM (large B*D on v7x), a second grid axis over Y tiles with an
    # online-softmax two-pass accumulation is required.
    return min(candidates)


def le_cosine_loss(x, y, t1, t2, margin=0.5, a=1.0, b=0.01, *,
                   block_rows=None, matmul_dtype=jnp.bfloat16):
    """Pallas implementation of LE_CosineLoss(margin, a, b).forward(X, Y, t1, t2).

    `margin` is stored but unused in the reference forward pass.
    """
    del margin
    x = jnp.asarray(x)
    y = jnp.asarray(y, dtype=jnp.float32)
    B, D = x.shape
    eps = 1e-12

    # Hoisted out of the grid loop: normalize Y once (f32) and pre-transpose so
    # the kernel's matmul is a plain (TB, D) @ (D, B) with no per-tile XLU
    # transpose or re-normalization.
    yn = y * lax.rsqrt(jnp.maximum(jnp.sum(y * y, axis=1, keepdims=True), eps * eps))
    ynt = yn.T.astype(matmul_dtype)                    # (D, B)

    t1c = jnp.asarray(t1, dtype=jnp.int32).reshape(B, 1)
    t2r = jnp.asarray(t2, dtype=jnp.int32).reshape(1, B)

    mm_bytes = jnp.dtype(matmul_dtype).itemsize
    budget = int(_vmem_capacity_bytes() * 0.85)        # generation-aware headroom

    TB = block_rows if block_rows is not None else _select_block_rows(B, D, mm_bytes, budget)
    if B % TB != 0:
        raise ValueError(f"block_rows={TB} must divide batch size {B}")
    num_tiles = B // TB

    footprint = _tile_footprint_bytes(TB, B, D, mm_bytes)
    vmem_limit = max(32 * 1024 * 1024, min(int(1.25 * footprint), budget))

    kernel = functools.partial(
        _le_cosine_kernel,
        pos_w=float(b), neg_w=float(a),
        inv_b2=1.0 / float(B * B),
        matmul_dtype=matmul_dtype)

    # TODO(synk): pipeline_mode=pl.Buffered(1) on the Y^T / t2 specs would drop
    # the second resident copy of Y; default double-buffering is kept here for
    # broad compatibility (bf16 Y already halves that footprint vs. f32).
    partials = pl.pallas_call(
        kernel,
        out_shape=jax.ShapeDtypeStruct((num_tiles * 8, 128), jnp.float32),
        grid=(num_tiles,),
        in_specs=[
            pl.BlockSpec((TB, D), lambda i: (i, 0)),   # X row tile (pipelined)
            pl.BlockSpec((D, B), lambda i: (0, 0)),    # pre-normalized Y^T, resident
            pl.BlockSpec((TB, 1), lambda i: (i, 0)),   # t1 row tile
            pl.BlockSpec((1, B), lambda i: (0, 0)),    # t2 fully resident
        ],
        out_specs=pl.BlockSpec((8, 128), lambda i: (i, 0)),
        compiler_params=pltpu.CompilerParams(
            dimension_semantics=("parallel",),
            vmem_limit_bytes=int(vmem_limit)),
    )(x, ynt, t1c, t2r)

    return jnp.sum(partials)


def _reference(x, y, t1, t2, a=1.0, b=0.01):
    """Pure-JAX reference mirroring the PyTorch forward (float32)."""
    eps = 1e-12
    xn = x / jnp.maximum(jnp.linalg.norm(x, axis=1, keepdims=True), eps)
    yn = y / jnp.maximum(jnp.linalg.norm(y, axis=1, keepdims=True), eps)
    z = xn @ yn.T
    z = jnp.exp(z) / jnp.sum(jnp.exp(z), axis=1, keepdims=True)
    pos = t1[:, None] == t2[None, :]
    pos_loss = -jnp.sum(jnp.where(pos, jnp.log(z), 0.0))
    neg_loss = -jnp.sum(jnp.where(pos, 0.0, jnp.log1p(-z)))
    bsz = x.shape[0]
    return (b * pos_loss + a * neg_loss) / (bsz * bsz)


if __name__ == "__main__":
    key = jax.random.PRNGKey(0)
    kx, ky, k1, k2 = jax.random.split(key, 4)

    B, D = 16, 128   # batch of embeddings, embedding dim
    X = jax.random.normal(kx, (B, D), dtype=jnp.float32)
    Y = jax.random.normal(ky, (B, D), dtype=jnp.float32)
    t1 = jax.random.randint(k1, (B,), 0, 4, dtype=jnp.int32)
    t2 = jax.random.randint(k2, (B,), 0, 4, dtype=jnp.int32)

    ref = _reference(X, Y, t1, t2, a=1.0, b=0.01)

    # f32 MXU operands + explicit 2-tile grid: tight check of the math and the
    # pipelined / "parallel" grid path.
    loss_f32 = le_cosine_loss(X, Y, t1, t2, margin=0.5, a=1.0, b=0.01,
                              block_rows=8, matmul_dtype=jnp.float32)
    loss_f32 = jax.block_until_ready(loss_f32)
    np.testing.assert_allclose(np.asarray(loss_f32), np.asarray(ref),
                               rtol=2e-3, atol=1e-5)

    # Default path: bf16 MXU operands + VMEM-aware automatic tile selection.
    loss_bf16 = le_cosine_loss(X, Y, t1, t2, margin=0.5, a=1.0, b=0.01)
    loss_bf16 = jax.block_until_ready(loss_bf16)
    np.testing.assert_allclose(np.asarray(loss_bf16), np.asarray(ref),
                               rtol=2e-2, atol=1e-3)

    print("KERNEL_OK")
</pallas_src>

<mosaic_0001>
module attributes {stable_mosaic.version = 11 : i64} {
  func.func @_le_cosine_kernel(%arg0: i32, %arg1: memref<8x128xf32, #tpu.memory_space<vmem>>, %arg2: memref<128x16xf32, #tpu.memory_space<vmem>>, %arg3: memref<8x1xi32, #tpu.memory_space<vmem>>, %arg4: memref<1x16xi32, #tpu.memory_space<vmem>>, %arg5: memref<8x128xf32, #tpu.memory_space<vmem>>) attributes {dimension_semantics = [#tpu.dimension_semantics<parallel>], iteration_bounds = array<i64: 2>, scalar_prefetch = 0 : i64, scratch_operands = 0 : i64, tpu.core_type = #tpu.core_type<tc>, window_params = [{transform_indices = @transform_0, window_bounds = array<i64: 8, 128>}, {pipeline_mode = #tpu.pipeline_mode<synchronous>, transform_indices = @transform_1, window_bounds = array<i64: 128, 16>}, {transform_indices = @transform_2, window_bounds = array<i64: 8, 1>}, {pipeline_mode = #tpu.pipeline_mode<synchronous>, transform_indices = @transform_3, window_bounds = array<i64: 1, 16>}, {transform_indices = @transform_4, window_bounds = array<i64: 8, 128>}]} {
    %c0 = arith.constant 0 : index
    %c0_0 = arith.constant 0 : index
    %0 = vector.load %arg1[%c0, %c0_0] : memref<8x128xf32, #tpu.memory_space<vmem>>, vector<8x128xf32>
    %1 = arith.mulf %0, %0 : vector<8x128xf32>
    %cst = arith.constant dense<0.000000e+00> : vector<8xf32>
    %2 = vector.multi_reduction <add>, %1, %cst [1] : vector<8x128xf32> to vector<8xf32>
    %3 = vector.shape_cast %2 : vector<8xf32> to vector<8x1xf32>
    %cst_1 = arith.constant 1.000000e-24 : f32
    %4 = vector.broadcast %cst_1 : f32 to vector<8x1xf32>
    %5 = arith.maximumf %3, %4 : vector<8x1xf32>
    %6 = math.rsqrt %5 : vector<8x1xf32>
    %7 = vector.broadcast %6 : vector<8x1xf32> to vector<8x128xf32>
    %8 = arith.mulf %0, %7 : vector<8x128xf32>
    %c0_2 = arith.constant 0 : index
    %c0_3 = arith.constant 0 : index
    %9 = vector.load %arg2[%c0_2, %c0_3] : memref<128x16xf32, #tpu.memory_space<vmem>>, vector<128x16xf32>
    %cst_4 = arith.constant dense<0.000000e+00> : vector<8x16xf32>
    %10 = tpu.matmul %8, %9, %cst_4 {dimension_numbers = #tpu.dot_dimension_numbers<[1], [0], [0], [1], [0, 0, 1, 1], [], []>} : vector<8x128xf32>, vector<128x16xf32>, vector<8x16xf32> -> vector<8x16xf32>
    %11 = math.exp %10 : vector<8x16xf32>
    %cst_5 = arith.constant dense<0.000000e+00> : vector<8xf32>
    %12 = vector.multi_reduction <add>, %11, %cst_5 [1] : vector<8x16xf32> to vector<8xf32>
    %13 = vector.shape_cast %12 : vector<8xf32> to vector<8x1xf32>
    %c0_6 = arith.constant 0 : index
    %c0_7 = arith.constant 0 : index
    %14 = vector.load %arg3[%c0_6, %c0_7] : memref<8x1xi32, #tpu.memory_space<vmem>>, vector<8x1xi32>
    %c0_8 = arith.constant 0 : index
    %c0_9 = arith.constant 0 : index
    %15 = vector.load %arg4[%c0_8, %c0_9] : memref<1x16xi32, #tpu.memory_space<vmem>>, vector<1x16xi32>
    %16 = vector.broadcast %14 : vector<8x1xi32> to vector<8x16xi32>
    %17 = vector.broadcast %15 : vector<1x16xi32> to vector<8x16xi32>
    %18 = arith.cmpi eq, %16, %17 : vector<8x16xi32>
    %cst_10 = arith.constant 0.000000e+00 : f32
    %19 = vector.broadcast %cst_10 : f32 to vector<8x16xf32>
    %20 = arith.subf %19, %11 : vector<8x16xf32>
    %21 = tpu.reciprocal %13 {approx = true} : vector<8x1xf32> -> vector<8x1xf32>
    %22 = vector.broadcast %21 : vector<8x1xf32> to vector<8x16xf32>
    %23 = arith.mulf %20, %22 : vector<8x16xf32>
    %24 = math.log1p %23 : vector<8x16xf32>
    %cst_11 = arith.constant 1.000000e+00 : f32
    %25 = vector.broadcast %cst_11 : f32 to vector<8x16xf32>
    %26 = arith.mulf %25, %24 : vector<8x16xf32>
    %27 = math.log %13 : vector<8x1xf32>
    %28 = vector.broadcast %27 : vector<8x1xf32> to vector<8x16xf32>
    %29 = arith.subf %10, %28 : vector<8x16xf32>
    %cst_12 = arith.constant 0.00999999977 : f32
    %30 = vector.broadcast %cst_12 : f32 to vector<8x16xf32>
    %31 = arith.mulf %30, %29 : vector<8x16xf32>
    %32 = arith.select %18, %31, %26 : vector<8x16xi1>, vector<8x16xf32>
    %33 = vector.shape_cast %32 : vector<8x16xf32> to vector<1x8x16xf32>
    %cst_13 = arith.constant dense<0.000000e+00> : vector<1xf32>
    %34 = vector.multi_reduction <add>, %33, %cst_13 [1, 2] : vector<1x8x16xf32> to vector<1xf32>
    %35 = vector.shape_cast %34 : vector<1xf32> to vector<1x1x1xf32>
    %36 = vector.extract %35[0, 0, 0] : f32 from vector<1x1x1xf32>
    %cst_14 = arith.constant 0.000000e+00 : f32
    %37 = arith.subf %cst_14, %36 : f32
    %cst_15 = arith.constant 3.906250e-03 : f32
    %38 = arith.mulf %37, %cst_15 : f32
    %39 = tpu.iota {dimensions = array<i32: 0>} : vector<8x128xi32>
    %40 = tpu.iota {dimensions = array<i32: 1>} : vector<8x128xi32>
    %c0_i32 = arith.constant 0 : i32
    %41 = vector.broadcast %c0_i32 : i32 to vector<8x128xi32>
    %42 = arith.cmpi eq, %39, %41 : vector<8x128xi32>
    %c0_i32_16 = arith.constant 0 : i32
    %43 = vector.broadcast %c0_i32_16 : i32 to vector<8x128xi32>
    %44 = arith.cmpi eq, %40, %43 : vector<8x128xi32>
    %45 = arith.andi %42, %44 : vector<8x128xi1>
    %cst_17 = arith.constant 0.000000e+00 : f32
    %46 = vector.broadcast %38 : f32 to vector<8x128xf32>
    %47 = vector.broadcast %cst_17 : f32 to vector<8x128xf32>
    %48 = arith.select %45, %46, %47 : vector<8x128xi1>, vector<8x128xf32>
    %c0_18 = arith.constant 0 : index
    %c0_19 = arith.constant 0 : index
    %49 = vector.load %arg5[%c0_18, %c0_19] : memref<8x128xf32, #tpu.memory_space<vmem>>, vector<8x128xf32>
    tpu.vector_store %arg5[%c0_18, %c0_19], %48 {strides = array<i32>} : memref<8x128xf32, #tpu.memory_space<vmem>>, vector<8x128xf32>,
    return
  }
  func.func @transform_0(%arg0: i32) -> (i32, i32) {
    %c0_i32 = arith.constant 0 : i32
    %c0_i32_0 = arith.constant 0 : i32
    return %arg0, %c0_i32 : i32, i32
  }
  func.func @transform_1(%arg0: i32) -> (i32, i32) {
    %c0_i32 = arith.constant 0 : i32
    %c0_i32_0 = arith.constant 0 : i32
    %c0_i32_1 = arith.constant 0 : i32
    return %c0_i32, %c0_i32_0 : i32, i32
  }
  func.func @transform_2(%arg0: i32) -> (i32, i32) {
    %c0_i32 = arith.constant 0 : i32
    %c0_i32_0 = arith.constant 0 : i32
    return %arg0, %c0_i32 : i32, i32
  }
  func.func @transform_3(%arg0: i32) -> (i32, i32) {
    %c0_i32 = arith.constant 0 : i32
    %c0_i32_0 = arith.constant 0 : i32
    %c0_i32_1 = arith.constant 0 : i32
    return %c0_i32, %c0_i32_0 : i32, i32
  }
  func.func @transform_4(%arg0: i32) -> (i32, i32) {
    %c0_i32 = arith.constant 0 : i32
    %c0_i32_0 = arith.constant 0 : i32
    return %arg0, %c0_i32 : i32, i32
  }
}

</mosaic_0001>

<llo_original>
// kernel: tpu_custom_call.1
$region0: #{tpu_custom_call.1}
  #allocation0 [shape = 'u32[]', space=smem, size = 0x4, offset = 0x4, fixed_abs, tag = 'smem constant byte address 0x4 - core index']
  #allocation1 [shape = 'u32[144,128]{1,0:T(1,128)}', space=vmem, size = 0x12000, scoped, tag = 'internal scratch']
  %s0 = inlined_call_operand.vmem [shape: f32[16,128], index: 0, kind: input, shape index: {}]
  %s1 = inlined_call_operand.vmem [shape: f32[128,16], index: 1, kind: input, shape index: {}]
  %s2 = inlined_call_operand.vmem [shape: s32[16,1], index: 2, kind: input, shape index: {}]
  %s3 = inlined_call_operand.vmem [shape: s32[1,16], index: 3, kind: input, shape index: {}]
  %s4 = inlined_call_operand.hbm [shape: f32[16,128], index: 4, kind: output, shape index: {}]
  %s5 = sld [smem:[#allocation0]]
  $region49: #{tpu_custom_call.1} parent=0
    _
  %s7 = ssub.s32 1, %s5
  %s8 = scalar_select 0, %s7, %s5
  $region1: #{tpu_custom_call.1} parent=0
    #allocation2 [shape = 'u8[8192]{0}', space=vmem, size = 0x2000, scoped, tag = 'output window, operand 0']
    #allocation3 [shape = 's32[2]{0}', space=sflag, size = 0x8, scoped, tag = 'scoped memory for tpu_custom_call.1']
    %9 = vsyncpa [#allocation3], 0
    %s10 = scalar_lea.sflag [#allocation3], 1
    %11 = vsyncpa %s10, 0
    loop: start=0, step=1, limit=4
    $region2: #{tpu_custom_call.1} parent=1 // loop_pre_header
      _
    $region3: #{tpu_custom_call.1} parent=1 // loop_header
      %s13 = sphi 0, %s17
      %p14 = scmp.ge.s32.totalorder %s13, 4
      %s23 = sphi 0, %s25
      %s26 = sphi 0, %s23
      %s27 = sphi 0, %s26
      %s43 = sphi 0, %s27
      %s47 = sphi 0, %s47
      %s49 = sphi 0, %s47
      %s50 = sphi 0, %s49
      %s64 = sphi 0, %s50
      %s70 = sphi 0, %s72
      %s73 = sphi 0, %s70
      %s74 = sphi 0, %s73
      %s90 = sphi 0, %s74
      %s94 = sphi 0, %s94
      %s96 = sphi 0, %s94
      %s97 = sphi 0, %s96
      %s111 = sphi 0, %s97
      %s117 = sphi 0, %s119
      %s120 = sphi 0, %s117
      %s121 = sphi 0, %s120
      %s137 = sphi 0, %s121
    $region4: #{tpu_custom_call.1} parent=1 // loop_header_branch
      %16 = sbr.rel (%p14) target = $region8
    $region5: #{tpu_custom_call.1} parent=1 // loop_body
      %s18 = ssub.s32 %s13, 1
      %s19 = ssub.s32 %s13, 2
      %s20 = sadd.s32 %s13, 1
      %s21 = ssub.s32 %s13, %s20
      %p22 = scmp.eq.s32.totalorder %s21, 0
      %s24 = sadd.s32 %s23, 1
      %s25 = scalar_select %p22, %s23, %s24
      %p28 = pneg %p22
      %p29 = scmp.eq.s32.totalorder %s13, 1
      %p30 = por %p28, %p29
      %p31 = scmp.ne.s32.totalorder %s23, %s26
      %p32 = scmp.eq.s32.totalorder %s13, 0
      %p33 = por %p31, %p32
      %p34 = scmp.ne.s32.totalorder %s23, %s26
      %p35 = scmp.eq.s32.totalorder %s18, 1
      %p36 = por %p34, %p35
      %p37 = scmp.ne.s32.totalorder %s26, %s27
      %p38 = scmp.eq.s32.totalorder %s18, 0
      %p39 = por %p37, %p38
      %p40 = scmp.ne.s32.totalorder %s26, %s27
      %p41 = scmp.eq.s32.totalorder %s19, 1
      %p42 = por %p40, %p41
      %p44 = scmp.ne.s32.totalorder %s27, %s43
      %p45 = scmp.eq.s32.totalorder %s19, 0
      %p46 = por %p44, %p45
      %s48 = sadd.s32 %s47, 1
      %p51 = scmp.eq.s32.totalorder %s13, 1
      %p52 = scmp.ne.s32.totalorder %s47, %s49
      %p53 = scmp.eq.s32.totalorder %s13, 0
      %p54 = por %p52, %p53
      %p55 = scmp.ne.s32.totalorder %s47, %s49
      %p56 = scmp.eq.s32.totalorder %s18, 1
      %p57 = por %p55, %p56
      %p58 = scmp.ne.s32.totalorder %s49, %s50
      %p59 = scmp.eq.s32.totalorder %s18, 0
      %p60 = por %p58, %p59
      %p61 = scmp.ne.s32.totalorder %s49, %s50
      %p62 = scmp.eq.s32.totalorder %s19, 1
      %p63 = por %p61, %p62
      %p65 = scmp.ne.s32.totalorder %s50, %s64
      %p66 = scmp.eq.s32.totalorder %s19, 0
      %p67 = por %p65, %p66
      %s68 = ssub.s32 %s13, %s20
      %p69 = scmp.eq.s32.totalorder %s68, 0
      %s71 = sadd.s32 %s70, 1
      %s72 = scalar_select %p69, %s70, %s71
      %p75 = pneg %p69
      %p76 = scmp.eq.s32.totalorder %s13, 1
      %p77 = por %p75, %p76
      %p78 = scmp.ne.s32.totalorder %s70, %s73
      %p79 = scmp.eq.s32.totalorder %s13, 0
      %p80 = por %p78, %p79
      %p81 = scmp.ne.s32.totalorder %s70, %s73
      %p82 = scmp.eq.s32.totalorder %s18, 1
      %p83 = por %p81, %p82
      %p84 = scmp.ne.s32.totalorder %s73, %s74
      %p85 = scmp.eq.s32.totalorder %s18, 0
      %p86 = por %p84, %p85
      %p87 = scmp.ne.s32.totalorder %s73, %s74
      %p88 = scmp.eq.s32.totalorder %s19, 1
      %p89 = por %p87, %p88
      %p91 = scmp.ne.s32.totalorder %s74, %s90
      %p92 = scmp.eq.s32.totalorder %s19, 0
      %p93 = por %p91, %p92
      %s95 = sadd.s32 %s94, 1
      %p98 = scmp.eq.s32.totalorder %s13, 1
      %p99 = scmp.ne.s32.totalorder %s94, %s96
      %p100 = scmp.eq.s32.totalorder %s13, 0
      %p101 = por %p99, %p100
      %p102 = scmp.ne.s32.totalorder %s94, %s96
      %p103 = scmp.eq.s32.totalorder %s18, 1
      %p104 = por %p102, %p103
      %p105 = scmp.ne.s32.totalorder %s96, %s97
      %p106 = scmp.eq.s32.totalorder %s18, 0
      %p107 = por %p105, %p106
      %p108 = scmp.ne.s32.totalorder %s96, %s97
      %p109 = scmp.eq.s32.totalorder %s19, 1
      %p110 = por %p108, %p109
      %p112 = scmp.ne.s32.totalorder %s97, %s111
      %p113 = scmp.eq.s32.totalorder %s19, 0
      %p114 = por %p112, %p113
      %s115 = ssub.s32 %s13, %s20
      %p116 = scmp.eq.s32.totalorder %s115, 0
      %s118 = sadd.s32 %s117, 1
      %s119 = scalar_select %p116, %s117, %s118
      %p122 = pneg %p116
      %p123 = scmp.eq.s32.totalorder %s13, 1
      %p124 = por %p122, %p123
      %p125 = scmp.ne.s32.totalorder %s117, %s120
      %p126 = scmp.eq.s32.totalorder %s13, 0
      %p127 = por %p125, %p126
      %p128 = scmp.ne.s32.totalorder %s117, %s120
      %p129 = scmp.eq.s32.totalorder %s18, 1
      %p130 = por %p128, %p129
      %p131 = scmp.ne.s32.totalorder %s120, %s121
      %p132 = scmp.eq.s32.totalorder %s18, 0
      %p133 = por %p131, %p132
      %p134 = scmp.ne.s32.totalorder %s120, %s121
      %p135 = scmp.eq.s32.totalorder %s19, 1
      %p136 = por %p134, %p135
      %p138 = scmp.ne.s32.totalorder %s121, %s137
      %p139 = scmp.eq.s32.totalorder %s19, 0
      %p140 = por %p138, %p139
      %p141 = scmp.le.s32.totalorder 1, %s13
      %p142 = scmp.lt.s32.totalorder %s13, 3
      %p143 = pnand %p141, %p142
      %p144 = pneg %p143
      // Predicated region
      $region9: #{tpu_custom_call.1} parent=5 // pred_check
        _
      $region10: #{tpu_custom_call.1} parent=5 // pred_check_branch
        %146 = sbr.rel (%p143) target = $region12
      $region11: #{tpu_custom_call.1} parent=5 // pred_region
        %s147 = ssub.s32 %s13, 1
        // Predicated region
        $region13: #{tpu_custom_call.1} parent=11 // pred_check
          %p148 = pneg %p60
        $region14: #{tpu_custom_call.1} parent=11 // pred_check_branch
          %150 = sbr.rel (%p148) target = $region16
        $region15: #{tpu_custom_call.1} parent=11 // pred_region
          _
        $region16: #{tpu_custom_call.1} parent=11 // pred_fallthru
          _
        // Predicated region
        $region17: #{tpu_custom_call.1} parent=11 // pred_check
          %p151 = pneg %p107
        $region18: #{tpu_custom_call.1} parent=11 // pred_check_branch
          %153 = sbr.rel (%p151) target = $region20
        $region19: #{tpu_custom_call.1} parent=11 // pred_region
          _
        $region20: #{tpu_custom_call.1} parent=11 // pred_fallthru
          _
      $region12: #{tpu_custom_call.1} parent=5 // pred_fallthru
        _
      %p154 = scmp.lt.s32.totalorder %s13, 2
      // Predicated region
      $region21: #{tpu_custom_call.1} parent=5 // pred_check
        %p155 = pneg %p154
      $region22: #{tpu_custom_call.1} parent=5 // pred_check_branch
        %157 = sbr.rel (%p155) target = $region24
      $region23: #{tpu_custom_call.1} parent=5 // pred_region
        // Predicated region
        $region25: #{tpu_custom_call.1} parent=23 // pred_check
          %p158 = pneg %p33
        $region26: #{tpu_custom_call.1} parent=23 // pred_check_branch
          %160 = sbr.rel (%p158) target = $region28
        $region27: #{tpu_custom_call.1} parent=23 // pred_region
          %p161 = scmp.lt.s32.totalorder %s13, 1
          %s162 = scalar_select %p161, %s13, 1
          %s163 = smul.addr %s162, 8
          %s164 = scalar_lea.vmem %s0, %s163
        $region28: #{tpu_custom_call.1} parent=23 // pred_fallthru
          _
        // Predicated region
        $region29: #{tpu_custom_call.1} parent=23 // pred_check
          %p165 = pneg %p80
        $region30: #{tpu_custom_call.1} parent=23 // pred_check_branch
          %167 = sbr.rel (%p165) target = $region32
        $region31: #{tpu_custom_call.1} parent=23 // pred_region
          %p168 = scmp.lt.s32.totalorder %s13, 1
          %s169 = scalar_select %p168, %s13, 1
          %s170 = smul.addr %s169, 8
          %s171 = scalar_lea.vmem %s2, %s170
        $region32: #{tpu_custom_call.1} parent=23 // pred_fallthru
          _
      $region24: #{tpu_custom_call.1} parent=5 // pred_fallthru
        _
      %p172 = scmp.le.s32.totalorder 1, %s13
      %p173 = scmp.lt.s32.totalorder %s13, 3
      %p174 = pnand %p172, %p173
      %p175 = pneg %p174
      // Predicated region
      $region33: #{tpu_custom_call.1} parent=5 // pred_check
        _
      $region34: #{tpu_custom_call.1} parent=5 // pred_check_branch
        %177 = sbr.rel (%p174) target = $region36
      $region35: #{tpu_custom_call.1} parent=5 // pred_region
        %s178 = ssub.s32 %s13, 1
        %p179 = scmp.lt.s32.totalorder %s18, 1
        %s180 = scalar_select %p179, %s18, 1
        %s181 = smul.addr %s180, 8
        %s182 = scalar_lea.vmem %s0, %s181
        %p183 = pneg %p39
        %p184 = pneg %p36
        %p185 = pneg %p60
        %p186 = pneg %p57
        %p187 = scmp.lt.s32.totalorder %s18, 1
        %s188 = scalar_select %p187, %s18, 1
        %s189 = smul.addr %s188, 8
        %s190 = scalar_lea.vmem %s2, %s189
        %p191 = pneg %p86
        %p192 = pneg %p83
        %p193 = pneg %p107
        %p194 = pneg %p104
        %p195 = pneg %p133
        %p196 = pneg %p130
        %s197 = sand.u32 %s120, 1
        %s198 = scalar_lea.sflag [#allocation3], %s197
        %s199 = sand.u32 %s120, 1
        %s200 = smul.addr %s199, 8
        %s201 = scalar_lea.vmem [#allocation2], %s200
        %p202 = scmp.lt.s32.totalorder %s18, 1
        %s203 = scalar_select %p202, %s18, 1
        %s204 = smul.addr %s203, 8
        %s205 = scalar_lea.vmem %s0, %s204
        %p206 = scmp.lt.s32.totalorder %s18, 1
        %s207 = scalar_select %p206, %s18, 1
        %s208 = smul.addr %s207, 8
        %s209 = scalar_lea.vmem %s2, %s208
        %v210 = vld [vmem:[%s205] sm:$0xff]
        %v211 = vmul.f32 %v210, %v210
        %212 = vadd.xlane.f32.xlu0 %v211
        %v213 = vpop.xlane.xlu0 %212
        %v214 = vmax.f32 %v213, 1e-24
        %v215 = vrsqrt.pop %v214
        %v216 = vmul.f32 %v210, %v215
        %v217 = vld [vmem:[%s1] sm:$0xff]
        %v218 = vld [vmem:[%s1 + $0x8] sm:$0xff]
        %v219 = vld [vmem:[%s1 + $0x10] sm:$0xff]
        %v220 = vld [vmem:[%s1 + $0x18] sm:$0xff]
        %v221 = vld [vmem:[%s1 + $0x20] sm:$0xff]
        %v222 = vld [vmem:[%s1 + $0x28] sm:$0xff]
        %v223 = vld [vmem:[%s1 + $0x30] sm:$0xff]
        %v224 = vld [vmem:[%s1 + $0x38] sm:$0xff]
        %v225 = vld [vmem:[%s1 + $0x40] sm:$0xff]
        %v226 = vld [vmem:[%s1 + $0x48] sm:$0xff]
        %v227 = vld [vmem:[%s1 + $0x50] sm:$0xff]
        %v228 = vld [vmem:[%s1 + $0x58] sm:$0xff]
        %v229 = vld [vmem:[%s1 + $0x60] sm:$0xff]
        %v230 = vld [vmem:[%s1 + $0x68] sm:$0xff]
        %v231 = vld [vmem:[%s1 + $0x70] sm:$0xff]
        %v232 = vld [vmem:[%s1 + $0x78] sm:$0xff]
        %233 = vmatprep.subr.mxu0 0.0
        %234 = vmatpush1.msra.mxu0 %v232
        %235 = vmatprep.subr.mxu0 0.0
        %236 = vmatpush1.msra.mxu0 %v231
        %237 = vmatprep.subr.mxu0 0.0
        %238 = vmatpush1.msra.mxu0 %v230
        %239 = vmatprep.subr.mxu0 0.0
        %240 = vmatpush1.msra.mxu0 %v229
        %241 = vmatprep.subr.mxu0 0.0
        %242 = vmatpush1.msra.mxu0 %v228
        %243 = vmatprep.subr.mxu0 0.0
        %244 = vmatpush1.msra.mxu0 %v227
        %245 = vmatprep.subr.mxu0 0.0
        %246 = vmatpush1.msra.mxu0 %v226
        %247 = vmatprep.subr.mxu0 0.0
        %248 = vmatpush1.msra.mxu0 %v225
        %249 = vmatprep.subr.mxu0 0.0
        %250 = vmatpush1.msra.mxu0 %v224
        %251 = vmatprep.subr.mxu0 0.0
        %252 = vmatpush1.msra.mxu0 %v223
        %253 = vmatprep.subr.mxu0 0.0
        %254 = vmatpush1.msra.mxu0 %v222
        %255 = vmatprep.subr.mxu0 0.0
        %256 = vmatpush1.msra.mxu0 %v221
        %257 = vmatprep.subr.mxu0 0.0
        %258 = vmatpush1.msra.mxu0 %v220
        %259 = vmatprep.subr.mxu0 0.0
        %260 = vmatpush1.msra.mxu0 %v219
        %261 = vmatprep.subr.mxu0 0.0
        %262 = vmatpush1.msra.mxu0 %v218
        %263 = vmatprep.subr.mxu0 0.0
        %264 = vmatpush1.msra.mxu0 %v217
        %265 = vmatprep.subr.mxu0 0.0
        %266 = vmatpush2.msra.mxu0 0.0
        %267 = vmatprep.subr.mxu0 0.0
        %268 = vmatpush2.msra.mxu0 0.0
        %269 = vmatprep.subr.mxu0 0.0
        %270 = vmatpush2.msra.mxu0 0.0
        %271 = vmatprep.subr.mxu0 0.0
        %272 = vmatpush2.msra.mxu0 0.0
        %273 = vmatprep.subr.mxu0 0.0
        %274 = vmatpush2.msra.mxu0 0.0
        %275 = vmatprep.subr.mxu0 0.0
        %276 = vmatpush2.msra.mxu0 0.0
        %277 = vmatprep.subr.mxu0 0.0
        %278 = vmatpush2.msra.mxu0 0.0
        %279 = vmatprep.subr.mxu0 0.0
        %280 = vmatpush2.msra.mxu0 0.0
        %281 = vmatprep.subr.mxu0 0.0
        %282 = vmatpush2.msra.mxu0 0.0
        %283 = vmatprep.subr.mxu0 0.0
        %284 = vmatpush2.msra.mxu0 0.0
        %285 = vmatprep.subr.mxu0 0.0
        %286 = vmatpush2.msra.mxu0 0.0
        %287 = vmatprep.subr.mxu0 0.0
        %288 = vmatpush2.msra.mxu0 0.0
        %289 = vmatprep.subr.mxu0 0.0
        %290 = vmatpush2.msra.mxu0 0.0
        %291 = vmatprep.subr.mxu0 0.0
        %292 = vmatpush2.msra.mxu0 0.0
        %293 = vmatprep.subr.mxu0 0.0
        %294 = vmatpush2.msra.mxu0 0.0
        %295 = vmatprep.subr.mxu0 0.0
        %296 = vmatpush2.msra.mxu0 0.0
        %297 = vmatprep.mubr.f32.mxu0 0.0
        %298 = vmatmul.mubr.f32.gmra.mxu0 %v216
        %v299 = vpop.f32.mrf.mxu0
        %v300 = vadd.f32 0.0, %v299
        %v301 = vpop.f32.mrf.mxu0
        %302 = vdwg.mxu0
        %v303 = vmul.f32 %v300, 1.442695
        %v304 = vpow.pop %v303
        %vm305 = vcmask 130048
        %v306 = vsel %vm305, %v304, 0.0
        %307 = vadd.xlane.f32.xlu0 %v306
        %v308 = vpop.xlane.xlu0 %307
        %v309 = vld [vmem:[%s209] sm:$0xff]
        %v310 = vld [vmem:[%s3] sm:$0x1]
        %311 = vset.pattern.permute.xlu0 0
        %312 = vperm.xlu0 %311, %v309
        %v313 = vpop.permute.xlu0 %312
        %v314 = vlaneseq
        %v315 = vshrl.u32 %v314, 7
        %v316 = vsub.s32 0, %v315
        %v317 = vrot.slane %v310, %v316
        %vm318 = vcmp.eq.s32.totalorder %v313, %v317
        %v319 = vsub.f32 0.0, %v304
        %v320 = vrcp.pop %v308
        %v321 = vmul.f32 %v319, %v320
        %v322 = vadd.f32 %v321, 1.0
        %v323 = vlog2.pop %v322
        %v324 = vmul.f32 %v323, 0.6931472
        %v325 = vmul.f32 -0.5, %v321
        %v326 = vadd.f32 %v325, 1.0
        %v327 = vmul.f32 %v326, %v321
        %v328 = vand.u32 2147483647, %v321
        %vm329 = vcmp.lt.f32.partialorder %v328, 0.0004427343
        %v330 = vsel %vm329, %v327, %v324
        %v331 = vlog2.pop %v308
        %v332 = vmul.f32 %v331, 0.6931472
        %v333 = vsub.f32 %v300, %v332
        %v334 = vmul.f32 %v333, 0.01
        %v335 = vsel %vm318, %v334, %v330
        %v336 = vsel %vm305, %v335, 0.0
        %337 = vadd.xlane.f32.xlu0 %v336
        %v338 = vpop.xlane.xlu0 %337
        %v339 = vrot.slane %v338, 4
        %v340 = vadd.f32 %v338, %v339
        %v341 = vrot.slane %v340, 2
        %v342 = vadd.f32 %v340, %v341
        %v343 = vrot.slane %v342, 1
        %v344 = vadd.f32 %v342, %v343
        %s345 = vtos %v344
        %s346 = ssub.f32 0.0, %s345
        %s347 = smul.f32 %s346, 0.00390625
        %v348 = vlaneseq
        %v349 = vshrl.u32 %v348, 7
        %v350 = vlaneseq
        %v351 = vand.u32 %v350, 127
        %vm352 = vcmp.eq.s32.totalorder %v349, 0
        %vm353 = vcmp.eq.s32.totalorder %v351, 0
        %vm354 = vmand %vm352, %vm353
        %v355 = vstv %s347
        %v356 = vsel %vm354, %v355, 0.0
        %357 = vst [vmem:[%s201] sm:$0xff] %v356
        %s358 = sand.u32 %s120, 1
        %s359 = scalar_lea.sflag [#allocation3], %s358
        %s360 = sand.u32 %s120, 1
        %s361 = smul.addr %s360, 8
        %s362 = scalar_lea.vmem [#allocation2], %s361
        // Predicated region
        $region37: #{tpu_custom_call.1} parent=35 // pred_check
          %p363 = pneg %p130
        $region38: #{tpu_custom_call.1} parent=35 // pred_check_branch
          %365 = sbr.rel (%p363) target = $region40
        $region39: #{tpu_custom_call.1} parent=35 // pred_region
          %s367 = ssub.s32 128, 128
          %368 = vsyncadd %s359, %s367
          %s369 = smul.addr %s18, 128
          %s370 = scalar_lea.hbm %s4, %s369
          %s372 = sshll.u32 %s362, 4
          %s373 = int_to_ptr.vmem [resolvable:$true] %s372
          %375 = dma.vmem_to_hbm [thread:$0]  %s373, 128, %s370, %s359
        $region40: #{tpu_custom_call.1} parent=35 // pred_fallthru
          _
      $region36: #{tpu_custom_call.1} parent=5 // pred_fallthru
        _
      %p376 = scmp.le.s32.totalorder 2, %s13
      // Predicated region
      $region41: #{tpu_custom_call.1} parent=5 // pred_check
        %p377 = pneg %p376
      $region42: #{tpu_custom_call.1} parent=5 // pred_check_branch
        %379 = sbr.rel (%p377) target = $region44
      $region43: #{tpu_custom_call.1} parent=5 // pred_region
        %s380 = ssub.s32 %s13, 2
        // Predicated region
        $region45: #{tpu_custom_call.1} parent=43 // pred_check
          %p381 = pneg %p136
        $region46: #{tpu_custom_call.1} parent=43 // pred_check_branch
          %383 = sbr.rel (%p381) target = $region48
        $region47: #{tpu_custom_call.1} parent=43 // pred_region
          %s384 = sand.u32 %s121, 1
          %s385 = scalar_lea.sflag [#allocation3], %s384
          %s386 = sand.u32 %s121, 1
          %s387 = smul.addr %s386, 8
          %s388 = scalar_lea.vmem [#allocation2], %s387
          %389 = dma.done %s385, 128
        $region48: #{tpu_custom_call.1} parent=43 // pred_fallthru
          _
      $region44: #{tpu_custom_call.1} parent=5 // pred_fallthru
        _
    $region6: #{tpu_custom_call.1} parent=1 // loop_footer
      %s17 = sadd.s32 1, %s13
    $region7: #{tpu_custom_call.1} parent=1 // loop_footer_branch
      %12 = sbr.rel target = $region3
    $region8: #{tpu_custom_call.1} parent=1 // loop_exit
      _
    %390 = vsyncpa [#allocation3], 1
    %s391 = scalar_lea.sflag [#allocation3], 1
    %392 = vsyncpa %s391, 1

</llo_original>
